<compile_context>
chip_gen: v5e
topology: v5e:2x2
jax: 0.10.0
libtpu: 0.0.40
codegen_flags: <defaults>
</compile_context>

<pallas_src>
import functools

import jax
import jax.numpy as jnp
from jax.experimental import pallas as pl
from jax.experimental.pallas import tpu as pltpu

INPUT_DIM = 32
H1 = 512
H2 = 256
LEAK = 0.2


def _round_up(n, m):
    return ((n + m - 1) // m) * m


def _chip_flavor():
    """Coarse TPU-generation detection for per-chip tuning (safe fallbacks)."""
    try:
        kind = jax.devices()[0].device_kind.lower()
    except Exception:
        kind = ""
    is_v7x = ("v7" in kind) or ("7x" in kind)
    has_bf16_vpu = is_v7x or ("v6" in kind)
    return has_bf16_vpu, is_v7x


def critic_kernel(x_ref, w1_ref, b1_ref, w2_ref, b2_ref, w3_ref, b3_ref, o_ref,
                  *, bf16_epilogue):
    """Fused 3-layer MLP for one batch tile of `bt` rows."""
    x = x_ref[...].astype(jnp.bfloat16)

    # Layer 1: (bt, 32) @ (32, 512) -> (bt, 512); bf16 operands, f32 accumulation.
    h1 = jnp.dot(x, w1_ref[...], preferred_element_type=jnp.float32)
    if bf16_epilogue:
        # v6e/v7x: bf16 VALU -> do bias-add + LeakyReLU in bf16 (one down-cast,
        # 2x elements per vreg op); this also feeds layer 2 directly.
        h1 = h1.astype(jnp.bfloat16) + b1_ref[...].astype(jnp.bfloat16)
        h1 = jnp.maximum(h1, LEAK * h1)
    else:
        # v5e path: no bf16 VPU -> keep the epilogue in f32, cast once for MXU.
        h1 = h1 + b1_ref[...]
        h1 = jnp.maximum(h1, LEAK * h1)
        h1 = h1.astype(jnp.bfloat16)

    # Layer 2: (bt, 512) @ (512, 256) -> (bt, 256).
    h2 = jnp.dot(h1, w2_ref[...], preferred_element_type=jnp.float32)
    if bf16_epilogue:
        h2 = h2.astype(jnp.bfloat16) + b2_ref[...].astype(jnp.bfloat16)
        h2 = jnp.maximum(h2, LEAK * h2)
        # Layer 3: VPU multiply in bf16, but accumulate the 256-term sum in f32.
        prod = h2 * w3_ref[...].astype(jnp.bfloat16)
        s = jnp.sum(prod.astype(jnp.float32), axis=-1)          # (bt,)
    else:
        h2 = h2 + b2_ref[...]
        h2 = jnp.maximum(h2, LEAK * h2)
        s = jnp.sum(h2 * w3_ref[...], axis=-1)                   # (bt,), f32

    # Lane-dense (1, bt) store of the scores.
    o_ref[...] = (s.reshape(1, -1) + b3_ref[...]).astype(o_ref.dtype)


def critic_forward(x, params, *, batch_tile=None):
    """x: (B, INPUT_DIM) float32 -> (B, 1) float32."""
    w1, b1, w2, b2, w3, b3 = params
    B, D = x.shape

    has_bf16_vpu, is_v7x = _chip_flavor()
    if batch_tile is None:
        batch_tile = 4096 if has_bf16_vpu else 2048

    # Tile is a multiple of 128 (lane-dense output, MXU-friendly M), capped so a
    # small batch doesn't over-pad.
    bt = min(_round_up(batch_tile, 128), _round_up(B, 128))
    if is_v7x:
        bt = min(bt, 8192)  # 64 MiB VMEM on v7x; amortization saturates by ~4096
        # Ensure >= 2 grid steps when possible so both TensorCores get work.
        if _round_up(B, bt) // bt < 2 and B > 128:
            bt = max(128, min(bt, _round_up(B, 256) // 2))

    B_pad = _round_up(B, bt)
    if B_pad != B:
        x = jnp.pad(x, ((0, B_pad - B), (0, 0)))
    grid = (B_pad // bt,)

    full = lambda shape: pl.BlockSpec(shape, lambda i: (0, 0))  # VMEM-resident

    kernel = functools.partial(critic_kernel, bf16_epilogue=has_bf16_vpu)

    out = pl.pallas_call(
        kernel,
        out_shape=jax.ShapeDtypeStruct((1, B_pad), jnp.float32),
        grid_spec=pl.GridSpec(
            grid=grid,
            in_specs=[
                pl.BlockSpec((bt, D), lambda i: (i, 0)),  # x batch tile
                full((D, H1)),   # w1 (bf16)
                full((1, H1)),   # b1 (f32)
                full((H1, H2)),  # w2 (bf16)
                full((1, H2)),   # b2 (f32)
                full((1, H2)),   # w3 row (f32)
                full((1, 1)),    # b3 (f32)
            ],
            out_specs=pl.BlockSpec((1, bt), lambda i: (0, i)),  # lane-dense scores
        ),
        compiler_params=pltpu.CompilerParams(
            dimension_semantics=("parallel",),
            vmem_limit_bytes=48 << 20,   # big-tile intermediates exceed scoped default
        ),
    )(x, w1, b1, w2, b2, w3, b3)

    return out[0, :B].reshape(B, 1)


def init_params(key, input_dim):
    """Deterministic synthetic parameters (shapes mirror the PyTorch module).

    PyTorch Linear stores W as (out, in); we store the transpose (in, out).
    The two big matmul weights are pre-cast to bf16 (MXU operands); biases and
    the final (1, 256) weight row stay f32."""
    ks = jax.random.split(key, 6)

    def lin(kw, kb, fan_in, fan_out):
        bound = 1.0 / jnp.sqrt(fan_in)
        w = jax.random.uniform(kw, (fan_in, fan_out), jnp.float32, -bound, bound)
        b = jax.random.uniform(kb, (1, fan_out), jnp.float32, -bound, bound)
        return w, b

    w1, b1 = lin(ks[0], ks[1], input_dim, H1)
    w2, b2 = lin(ks[2], ks[3], H1, H2)
    w3, b3 = lin(ks[4], ks[5], H2, 1)
    w1 = w1.astype(jnp.bfloat16)
    w2 = w2.astype(jnp.bfloat16)
    w3 = w3.reshape(1, H2)          # stored as a row for the VPU reduction
    b3 = b3.reshape(1, 1)
    return (w1, b1, w2, b2, w3, b3)


def critic_ref(x, params, *, bf16_epilogue):
    """Pure-JAX reference mirroring the kernel's precision path."""
    w1, b1, w2, b2, w3, b3 = params
    f32 = jnp.float32

    def mm(a_bf16, w_bf16):
        return jnp.dot(a_bf16.astype(f32), w_bf16.astype(f32),
                       precision=jax.lax.Precision.HIGHEST)

    x16 = x.astype(jnp.bfloat16)
    h1 = mm(x16, w1)
    if bf16_epilogue:
        h1 = h1.astype(jnp.bfloat16) + b1.astype(jnp.bfloat16)
        h1 = jnp.maximum(h1, LEAK * h1)
        h2 = mm(h1, w2)
        h2 = h2.astype(jnp.bfloat16) + b2.astype(jnp.bfloat16)
        h2 = jnp.maximum(h2, LEAK * h2)
        prod = h2 * w3.astype(jnp.bfloat16)
        s = jnp.sum(prod.astype(f32), axis=-1, keepdims=True)
    else:
        h1 = h1 + b1
        h1 = jnp.maximum(h1, LEAK * h1)
        h2 = mm(h1.astype(jnp.bfloat16), w2)
        h2 = h2 + b2
        h2 = jnp.maximum(h2, LEAK * h2)
        s = jnp.sum(h2 * w3, axis=-1, keepdims=True)
    return s + b3


if __name__ == "__main__":
    key = jax.random.PRNGKey(0)
    k_x, k_x2, k_p = jax.random.split(key, 3)
    params = init_params(k_p, INPUT_DIM)
    bf16_ep, _ = _chip_flavor()

    # Small batch (pads up to one 128-row tile).
    batch = 16
    x = jax.random.normal(k_x, (batch, INPUT_DIM), jnp.float32)
    out = jax.block_until_ready(critic_forward(x, params))
    ref = critic_ref(x, params, bf16_epilogue=bf16_ep)
    assert out.shape == (batch, 1)
    assert jnp.allclose(out, ref, atol=2e-2, rtol=2e-2), "mismatch vs reference (small batch)"

    # Multi-tile path: 2 grid steps with batch_tile=128.
    batch2 = 256
    x2 = jax.random.normal(k_x2, (batch2, INPUT_DIM), jnp.float32)
    out2 = jax.block_until_ready(critic_forward(x2, params, batch_tile=128))
    ref2 = critic_ref(x2, params, bf16_epilogue=bf16_ep)
    assert out2.shape == (batch2, 1)
    assert jnp.allclose(out2, ref2, atol=2e-2, rtol=2e-2), "mismatch vs reference (multi-tile)"

    print("KERNEL_OK")
</pallas_src>

<mosaic_0001>
module attributes {stable_mosaic.version = 11 : i64} {
  func.func @critic_kernel(%arg0: i32, %arg1: memref<128x32xf32, #tpu.memory_space<vmem>>, %arg2: memref<32x512xbf16, #tpu.memory_space<vmem>>, %arg3: memref<1x512xf32, #tpu.memory_space<vmem>>, %arg4: memref<512x256xbf16, #tpu.memory_space<vmem>>, %arg5: memref<1x256xf32, #tpu.memory_space<vmem>>, %arg6: memref<1x256xf32, #tpu.memory_space<vmem>>, %arg7: memref<1x1xf32, #tpu.memory_space<vmem>>, %arg8: memref<1x128xf32, #tpu.memory_space<vmem>>) attributes {dimension_semantics = [#tpu.dimension_semantics<parallel>], iteration_bounds = array<i64: 1>, scalar_prefetch = 0 : i64, scratch_operands = 0 : i64, tpu.core_type = #tpu.core_type<tc>, window_params = [{transform_indices = @transform_0, window_bounds = array<i64: 128, 32>}, {pipeline_mode = #tpu.pipeline_mode<synchronous>, transform_indices = @transform_1, window_bounds = array<i64: 32, 512>}, {pipeline_mode = #tpu.pipeline_mode<synchronous>, transform_indices = @transform_2, window_bounds = array<i64: 1, 512>}, {pipeline_mode = #tpu.pipeline_mode<synchronous>, transform_indices = @transform_3, window_bounds = array<i64: 512, 256>}, {pipeline_mode = #tpu.pipeline_mode<synchronous>, transform_indices = @transform_4, window_bounds = array<i64: 1, 256>}, {pipeline_mode = #tpu.pipeline_mode<synchronous>, transform_indices = @transform_5, window_bounds = array<i64: 1, 256>}, {pipeline_mode = #tpu.pipeline_mode<synchronous>, transform_indices = @transform_6, window_bounds = array<i64: 1, 1>}, {transform_indices = @transform_7, window_bounds = array<i64: 1, 128>}]} {
    %c0 = arith.constant 0 : index
    %c0_0 = arith.constant 0 : index
    %0 = vector.load %arg1[%c0, %c0_0] : memref<128x32xf32, #tpu.memory_space<vmem>>, vector<128x32xf32>
    %1 = arith.truncf %0 : vector<128x32xf32> to vector<128x32xbf16>
    %c0_1 = arith.constant 0 : index
    %c0_2 = arith.constant 0 : index
    %2 = vector.load %arg2[%c0_1, %c0_2] : memref<32x512xbf16, #tpu.memory_space<vmem>>, vector<32x512xbf16>
    %cst = arith.constant dense<0.000000e+00> : vector<128x512xf32>
    %3 = tpu.matmul %1, %2, %cst {dimension_numbers = #tpu.dot_dimension_numbers<[1], [0], [0], [1], [0, 0, 1, 1], [], []>} : vector<128x32xbf16>, vector<32x512xbf16>, vector<128x512xf32> -> vector<128x512xf32>
    %c0_3 = arith.constant 0 : index
    %c0_4 = arith.constant 0 : index
    %4 = vector.load %arg3[%c0_3, %c0_4] : memref<1x512xf32, #tpu.memory_space<vmem>>, vector<1x512xf32>
    %5 = vector.broadcast %4 : vector<1x512xf32> to vector<128x512xf32>
    %6 = arith.addf %3, %5 : vector<128x512xf32>
    %cst_5 = arith.constant 2.000000e-01 : f32
    %7 = vector.broadcast %cst_5 : f32 to vector<128x512xf32>
    %8 = arith.mulf %7, %6 : vector<128x512xf32>
    %9 = arith.maximumf %6, %8 : vector<128x512xf32>
    %10 = arith.truncf %9 : vector<128x512xf32> to vector<128x512xbf16>
    %c0_6 = arith.constant 0 : index
    %c0_7 = arith.constant 0 : index
    %11 = vector.load %arg4[%c0_6, %c0_7] : memref<512x256xbf16, #tpu.memory_space<vmem>>, vector<512x256xbf16>
    %cst_8 = arith.constant dense<0.000000e+00> : vector<128x256xf32>
    %12 = tpu.matmul %10, %11, %cst_8 {dimension_numbers = #tpu.dot_dimension_numbers<[1], [0], [0], [1], [0, 0, 1, 1], [], []>} : vector<128x512xbf16>, vector<512x256xbf16>, vector<128x256xf32> -> vector<128x256xf32>
    %c0_9 = arith.constant 0 : index
    %c0_10 = arith.constant 0 : index
    %13 = vector.load %arg5[%c0_9, %c0_10] : memref<1x256xf32, #tpu.memory_space<vmem>>, vector<1x256xf32>
    %14 = vector.broadcast %13 : vector<1x256xf32> to vector<128x256xf32>
    %15 = arith.addf %12, %14 : vector<128x256xf32>
    %cst_11 = arith.constant 2.000000e-01 : f32
    %16 = vector.broadcast %cst_11 : f32 to vector<128x256xf32>
    %17 = arith.mulf %16, %15 : vector<128x256xf32>
    %18 = arith.maximumf %15, %17 : vector<128x256xf32>
    %c0_12 = arith.constant 0 : index
    %c0_13 = arith.constant 0 : index
    %19 = vector.load %arg6[%c0_12, %c0_13] : memref<1x256xf32, #tpu.memory_space<vmem>>, vector<1x256xf32>
    %20 = vector.broadcast %19 : vector<1x256xf32> to vector<128x256xf32>
    %21 = arith.mulf %18, %20 : vector<128x256xf32>
    %cst_14 = arith.constant dense<0.000000e+00> : vector<128xf32>
    %22 = vector.multi_reduction <add>, %21, %cst_14 [1] : vector<128x256xf32> to vector<128xf32>
    %23 = vector.shape_cast %22 : vector<128xf32> to vector<1x128xf32>
    %c0_15 = arith.constant 0 : index
    %c0_16 = arith.constant 0 : index
    %24 = vector.load %arg7[%c0_15, %c0_16] : memref<1x1xf32, #tpu.memory_space<vmem>>, vector<1x1xf32>
    %25 = vector.broadcast %24 : vector<1x1xf32> to vector<1x128xf32>
    %26 = arith.addf %23, %25 : vector<1x128xf32>
    %c0_17 = arith.constant 0 : index
    %c0_18 = arith.constant 0 : index
    %27 = vector.load %arg8[%c0_17, %c0_18] : memref<1x128xf32, #tpu.memory_space<vmem>>, vector<1x128xf32>
    tpu.vector_store %arg8[%c0_17, %c0_18], %26 {strides = array<i32>} : memref<1x128xf32, #tpu.memory_space<vmem>>, vector<1x128xf32>,
    return
  }
  func.func @transform_0(%arg0: i32) -> (i32, i32) {
    %c0_i32 = arith.constant 0 : i32
    %c0_i32_0 = arith.constant 0 : i32
    return %arg0, %c0_i32 : i32, i32
  }
  func.func @transform_1(%arg0: i32) -> (i32, i32) {
    %c0_i32 = arith.constant 0 : i32
    %c0_i32_0 = arith.constant 0 : i32
    %c0_i32_1 = arith.constant 0 : i32
    return %c0_i32, %c0_i32_0 : i32, i32
  }
  func.func @transform_2(%arg0: i32) -> (i32, i32) {
    %c0_i32 = arith.constant 0 : i32
    %c0_i32_0 = arith.constant 0 : i32
    %c0_i32_1 = arith.constant 0 : i32
    return %c0_i32, %c0_i32_0 : i32, i32
  }
  func.func @transform_3(%arg0: i32) -> (i32, i32) {
    %c0_i32 = arith.constant 0 : i32
    %c0_i32_0 = arith.constant 0 : i32
    %c0_i32_1 = arith.constant 0 : i32
    return %c0_i32, %c0_i32_0 : i32, i32
  }
  func.func @transform_4(%arg0: i32) -> (i32, i32) {
    %c0_i32 = arith.constant 0 : i32
    %c0_i32_0 = arith.constant 0 : i32
    %c0_i32_1 = arith.constant 0 : i32
    return %c0_i32, %c0_i32_0 : i32, i32
  }
  func.func @transform_5(%arg0: i32) -> (i32, i32) {
    %c0_i32 = arith.constant 0 : i32
    %c0_i32_0 = arith.constant 0 : i32
    %c0_i32_1 = arith.constant 0 : i32
    return %c0_i32, %c0_i32_0 : i32, i32
  }
  func.func @transform_6(%arg0: i32) -> (i32, i32) {
    %c0_i32 = arith.constant 0 : i32
    %c0_i32_0 = arith.constant 0 : i32
    %c0_i32_1 = arith.constant 0 : i32
    return %c0_i32, %c0_i32_0 : i32, i32
  }
  func.func @transform_7(%arg0: i32) -> (i32, i32) {
    %c0_i32 = arith.constant 0 : i32
    %c0_i32_0 = arith.constant 0 : i32
    return %c0_i32, %arg0 : i32, i32
  }
}

</mosaic_0001>

<llo_original>
// kernel: tpu_custom_call.1
$region0: #{tpu_custom_call.1}
  #allocation0 [shape = 'u32[]', space=smem, size = 0x4, offset = 0x4, fixed_abs, tag = 'smem constant byte address 0x4 - core index']
  #allocation1 [shape = 'u32[72,128]{1,0:T(1,128)}', space=vmem, size = 0x9000, scoped, tag = 'internal scratch']
  #allocation2 [shape = 'f32[1,1]{1,0:T(1,128)S(1)}', space=vmem, size = 0x200, scoped, tag = 'scoped memory for tpu_custom_call.1']
  %s0 = inlined_call_operand.vmem [shape: f32[128,32], index: 0, kind: input, shape index: {}]
  %s1 = inlined_call_operand.vmem [shape: bf16[32,512], index: 1, kind: input, shape index: {}]
  %s2 = inlined_call_operand.vmem [shape: f32[1,512], index: 2, kind: input, shape index: {}]
  %s3 = inlined_call_operand.hbm [shape: bf16[512,256], index: 3, kind: input, shape index: {}]
  %s4 = inlined_call_operand.vmem [shape: f32[1,256], index: 4, kind: input, shape index: {}]
  %s5 = inlined_call_operand.vmem [shape: f32[1,256], index: 5, kind: input, shape index: {}]
  %s6 = inlined_call_operand.<no memory space> [shape: f32[1,1], index: 6, kind: input, shape index: {}]
  %s7 = inlined_call_operand.hbm [shape: f32[1,128], index: 7, kind: output, shape index: {}]
  %s8 = sld [smem:[#allocation0]]
  $region42: #{tpu_custom_call.1} parent=0
    _
  %s10 = ssub.s32 1, %s8
  %s11 = scalar_select 0, %s10, %s8
  %v12 = vstv %s6
  %13 = vst [vmem:[#allocation2] sm:$0x1] %v12
  $region1: #{tpu_custom_call.1} parent=0
    #allocation3 [shape = 'u8[262144]{0}', space=vmem, size = 0x40000, scoped, tag = 'input window, operand 3, single buffered']
    #allocation4 [shape = 's32[1]{0}', space=sflag, size = 0x4, scoped, tag = 'scoped memory for tpu_custom_call.1']
    #allocation5 [shape = 's32[1]{0}', space=sflag, size = 0x4, scoped, tag = 'scoped memory for tpu_custom_call.1']
    #allocation6 [shape = 'u8[512]{0}', space=vmem, size = 0x400, scoped, tag = 'output window, operand 0, single buffered']
    %14 = vsyncpa [#allocation4], 0
    %15 = vsyncpa [#allocation5], 0
    // Predicated region
    $region2: #{tpu_custom_call.1} parent=1 // pred_check
      _
    $region3: #{tpu_custom_call.1} parent=1 // pred_check_branch
      %17 = sbr.rel (0) target = $region5
    $region4: #{tpu_custom_call.1} parent=1 // pred_region
      _
    $region5: #{tpu_custom_call.1} parent=1 // pred_fallthru
      _
    // Predicated region
    $region6: #{tpu_custom_call.1} parent=1 // pred_check
      _
    $region7: #{tpu_custom_call.1} parent=1 // pred_check_branch
      %19 = sbr.rel (0) target = $region9
    $region8: #{tpu_custom_call.1} parent=1 // pred_region
      _
    $region9: #{tpu_custom_call.1} parent=1 // pred_fallthru
      _
    // Predicated region
    $region10: #{tpu_custom_call.1} parent=1 // pred_check
      _
    $region11: #{tpu_custom_call.1} parent=1 // pred_check_branch
      %21 = sbr.rel (0) target = $region13
    $region12: #{tpu_custom_call.1} parent=1 // pred_region
      _
    $region13: #{tpu_custom_call.1} parent=1 // pred_fallthru
      _
    // Predicated region
    $region14: #{tpu_custom_call.1} parent=1 // pred_check
      _
    $region15: #{tpu_custom_call.1} parent=1 // pred_check_branch
      %23 = sbr.rel (0) target = $region17
    $region16: #{tpu_custom_call.1} parent=1 // pred_region
      %25 = vsyncadd [#allocation4], 0
      %s26 = sshll.u32 %s3, 4
      %s27 = int_to_ptr.hbm [resolvable:$true] %s26
      %s28 = sshll.u32 [#allocation3], 4
      %s29 = int_to_ptr.vmem [resolvable:$true] %s28
      %34 = dma.hbm_to_vmem [thread:$0]  %s27, 8192, %s29, [#allocation4], 128, 128, 8
    $region17: #{tpu_custom_call.1} parent=1 // pred_fallthru
      _
    // Predicated region
    $region18: #{tpu_custom_call.1} parent=1 // pred_check
      _
    $region19: #{tpu_custom_call.1} parent=1 // pred_check_branch
      %36 = sbr.rel (0) target = $region21
    $region20: #{tpu_custom_call.1} parent=1 // pred_region
      _
    $region21: #{tpu_custom_call.1} parent=1 // pred_fallthru
      _
    // Predicated region
    $region22: #{tpu_custom_call.1} parent=1 // pred_check
      _
    $region23: #{tpu_custom_call.1} parent=1 // pred_check_branch
      %38 = sbr.rel (0) target = $region25
    $region24: #{tpu_custom_call.1} parent=1 // pred_region
      _
    $region25: #{tpu_custom_call.1} parent=1 // pred_fallthru
      _
    // Predicated region
    $region26: #{tpu_custom_call.1} parent=1 // pred_check
      _
    $region27: #{tpu_custom_call.1} parent=1 // pred_check_branch
      %40 = sbr.rel (0) target = $region29
    $region28: #{tpu_custom_call.1} parent=1 // pred_region
      _
    $region29: #{tpu_custom_call.1} parent=1 // pred_fallthru
      _
    // Predicated region
    $region30: #{tpu_custom_call.1} parent=1 // pred_check
      _
    $region31: #{tpu_custom_call.1} parent=1 // pred_check_branch
      %42 = sbr.rel (0) target = $region33
    $region32: #{tpu_custom_call.1} parent=1 // pred_region
      %44 = dma.done [#allocation4], 8192
    $region33: #{tpu_custom_call.1} parent=1 // pred_fallthru
      _
    %v46 = vld [vmem:[%s0] sm:$0xff]
    %v47 = vld [vmem:[%s0 + $0x8] sm:$0xff]
    %v48 = vld [vmem:[%s0 + $0x10] sm:$0xff]
    %v49 = vld [vmem:[%s0 + $0x18] sm:$0xff]
    %v50 = vld [vmem:[%s0 + $0x20] sm:$0xff]
    %v51 = vld [vmem:[%s0 + $0x28] sm:$0xff]
    %v52 = vld [vmem:[%s0 + $0x30] sm:$0xff]
    %v53 = vld [vmem:[%s0 + $0x38] sm:$0xff]
    %v54 = vld [vmem:[%s0 + $0x40] sm:$0xff]
    %v55 = vld [vmem:[%s0 + $0x48] sm:$0xff]
    %v56 = vld [vmem:[%s0 + $0x50] sm:$0xff]
    %v57 = vld [vmem:[%s0 + $0x58] sm:$0xff]
    %v58 = vld [vmem:[%s0 + $0x60] sm:$0xff]
    %v59 = vld [vmem:[%s0 + $0x68] sm:$0xff]
    %v60 = vld [vmem:[%s0 + $0x70] sm:$0xff]
    %v61 = vld [vmem:[%s0 + $0x78] sm:$0xff]
    %v62 = vpack.c.bf16 %v47, %v46
    %v63 = vpack.c.bf16 %v49, %v48
    %v64 = vpack.c.bf16 %v51, %v50
    %v65 = vpack.c.bf16 %v53, %v52
    %v66 = vpack.c.bf16 %v55, %v54
    %v67 = vpack.c.bf16 %v57, %v56
    %v68 = vpack.c.bf16 %v59, %v58
    %v69 = vpack.c.bf16 %v61, %v60
    %v70 = vld [vmem:[%s1] sm:$0xff]
    %v71 = vld [vmem:[%s1 + $0x8] sm:$0xff]
    %v72 = vld [vmem:[%s1 + $0x10] sm:$0xff]
    %v73 = vld [vmem:[%s1 + $0x18] sm:$0xff]
    %v74 = vld [vmem:[%s1 + $0x20] sm:$0xff]
    %v75 = vld [vmem:[%s1 + $0x28] sm:$0xff]
    %v76 = vld [vmem:[%s1 + $0x30] sm:$0xff]
    %v77 = vld [vmem:[%s1 + $0x38] sm:$0xff]
    %v78 = vld [vmem:[%s2] sm:$0xf]
    %v80 = vperm.slane %v78, 0
    %v81 = vperm.slane %v78, 1
    %v82 = vperm.slane %v78, 2
    %v83 = vperm.slane %v78, 3
    %v96 = vunpack.c.l.b16 %v70
    %v97 = vunpack.c.h.b16 %v70
    %v98 = vunpack.c.l.b16 %v71
    %v99 = vunpack.c.h.b16 %v71
    %v100 = vunpack.c.l.b16 %v72
    %v101 = vunpack.c.h.b16 %v72
    %v102 = vunpack.c.l.b16 %v73
    %v103 = vunpack.c.h.b16 %v73
    %v104 = vunpack.c.l.b16 %v74
    %v105 = vunpack.c.h.b16 %v74
    %v106 = vunpack.c.l.b16 %v75
    %v107 = vunpack.c.h.b16 %v75
    %v108 = vunpack.c.l.b16 %v76
    %v109 = vunpack.c.h.b16 %v76
    %v110 = vunpack.c.l.b16 %v77
    %v111 = vunpack.c.h.b16 %v77
    %v112 = vpack.c.b16 %v100, %v96
    %v113 = vpack.c.b16 %v101, %v97
    %v114 = vpack.c.b16 %v102, %v98
    %v115 = vpack.c.b16 %v103, %v99
    %v116 = vpack.c.b16 %v108, %v104
    %v117 = vpack.c.b16 %v109, %v105
    %v118 = vpack.c.b16 %v110, %v106
    %v119 = vpack.c.b16 %v111, %v107
    %vm128 = vcmask 261120
    %v130 = vsel %vm128, %v62, 0
    %v133 = vsel %vm128, %v63, 0
    %v136 = vsel %vm128, %v64, 0
    %v139 = vsel %vm128, %v65, 0
    %v142 = vsel %vm128, %v66, 0
    %v145 = vsel %vm128, %v67, 0
    %v148 = vsel %vm128, %v68, 0
    %v151 = vsel %vm128, %v69, 0
    %153 = vmatpush.bf16.msra.mxu0 0
    %154 = vmatpush.bf16.msra.mxu0 0
    %155 = vmatpush.bf16.msra.mxu0 0
    %156 = vmatpush.bf16.msra.mxu0 0
    %157 = vmatpush.bf16.msra.mxu0 0
    %158 = vmatpush.bf16.msra.mxu0 0
    %159 = vmatpush.bf16.msra.mxu0 %v116
    %160 = vmatpush.bf16.msra.mxu0 %v112
    %161 = vmatmul.bf16.gmra.mxu0 %v130
    %v162 = vpop.f32.mrf.mxu0
    %v163 = vadd.f32 %v80, %v162
    %v164 = vpop.f32.mrf.mxu0
    %v165 = vadd.f32 %v80, %v164
    %166 = vmatmul.bf16.gmra.mxu0 %v133
    %v167 = vpop.f32.mrf.mxu0
    %v168 = vadd.f32 %v80, %v167
    %v169 = vpop.f32.mrf.mxu0
    %v170 = vadd.f32 %v80, %v169
    %171 = vmatmul.bf16.gmra.mxu0 %v136
    %v172 = vpop.f32.mrf.mxu0
    %v173 = vadd.f32 %v80, %v172
    %v174 = vpop.f32.mrf.mxu0
    %v175 = vadd.f32 %v80, %v174
    %176 = vmatmul.bf16.gmra.mxu0 %v139
    %v177 = vpop.f32.mrf.mxu0
    %v178 = vadd.f32 %v80, %v177
    %v179 = vpop.f32.mrf.mxu0
    %v180 = vadd.f32 %v80, %v179
    %181 = vmatmul.bf16.gmra.mxu0 %v142
    %v182 = vpop.f32.mrf.mxu0
    %v183 = vadd.f32 %v80, %v182
    %v184 = vpop.f32.mrf.mxu0
    %v185 = vadd.f32 %v80, %v184
    %186 = vmatmul.bf16.gmra.mxu0 %v145
    %v187 = vpop.f32.mrf.mxu0
    %v188 = vadd.f32 %v80, %v187
    %v189 = vpop.f32.mrf.mxu0
    %v190 = vadd.f32 %v80, %v189
    %191 = vmatmul.bf16.gmra.mxu0 %v148
    %v192 = vpop.f32.mrf.mxu0
    %v193 = vadd.f32 %v80, %v192
    %v194 = vpop.f32.mrf.mxu0
    %v195 = vadd.f32 %v80, %v194
    %196 = vmatmul.bf16.gmra.mxu0 %v151
    %v197 = vpop.f32.mrf.mxu0
    %v198 = vadd.f32 %v80, %v197
    %v199 = vpop.f32.mrf.mxu0
    %v200 = vadd.f32 %v80, %v199
    %201 = vdwg.mxu0
    %202 = vmatpush.bf16.msra.mxu0 0
    %203 = vmatpush.bf16.msra.mxu0 0
    %204 = vmatpush.bf16.msra.mxu0 0
    %205 = vmatpush.bf16.msra.mxu0 0
    %206 = vmatpush.bf16.msra.mxu0 0
    %207 = vmatpush.bf16.msra.mxu0 0
    %208 = vmatpush.bf16.msra.mxu0 %v117
    %209 = vmatpush.bf16.msra.mxu0 %v113
    %210 = vmatmul.bf16.gmra.mxu0 %v130
    %v211 = vpop.f32.mrf.mxu0
    %v212 = vadd.f32 %v81, %v211
    %v213 = vpop.f32.mrf.mxu0
    %v214 = vadd.f32 %v81, %v213
    %215 = vmatmul.bf16.gmra.mxu0 %v133
    %v216 = vpop.f32.mrf.mxu0
    %v217 = vadd.f32 %v81, %v216
    %v218 = vpop.f32.mrf.mxu0
    %v219 = vadd.f32 %v81, %v218
    %220 = vmatmul.bf16.gmra.mxu0 %v136
    %v221 = vpop.f32.mrf.mxu0
    %v222 = vadd.f32 %v81, %v221
    %v223 = vpop.f32.mrf.mxu0
    %v224 = vadd.f32 %v81, %v223
    %225 = vmatmul.bf16.gmra.mxu0 %v139
    %v226 = vpop.f32.mrf.mxu0
    %v227 = vadd.f32 %v81, %v226
    %v228 = vpop.f32.mrf.mxu0
    %v229 = vadd.f32 %v81, %v228
    %230 = vmatmul.bf16.gmra.mxu0 %v142
    %v231 = vpop.f32.mrf.mxu0
    %v232 = vadd.f32 %v81, %v231
    %v233 = vpop.f32.mrf.mxu0
    %v234 = vadd.f32 %v81, %v233
    %235 = vmatmul.bf16.gmra.mxu0 %v145
    %v236 = vpop.f32.mrf.mxu0
    %v237 = vadd.f32 %v81, %v236
    %v238 = vpop.f32.mrf.mxu0
    %v239 = vadd.f32 %v81, %v238
    %240 = vmatmul.bf16.gmra.mxu0 %v148
    %v241 = vpop.f32.mrf.mxu0
    %v242 = vadd.f32 %v81, %v241
    %v243 = vpop.f32.mrf.mxu0
    %v244 = vadd.f32 %v81, %v243
    %245 = vmatmul.bf16.gmra.mxu0 %v151
    %v246 = vpop.f32.mrf.mxu0
    %v247 = vadd.f32 %v81, %v246
    %v248 = vpop.f32.mrf.mxu0
    %v249 = vadd.f32 %v81, %v248
    %250 = vdwg.mxu0
    %251 = vmatpush.bf16.msra.mxu0 0
    %252 = vmatpush.bf16.msra.mxu0 0
    %253 = vmatpush.bf16.msra.mxu0 0
    %254 = vmatpush.bf16.msra.mxu0 0
    %255 = vmatpush.bf16.msra.mxu0 0
    %256 = vmatpush.bf16.msra.mxu0 0
    %257 = vmatpush.bf16.msra.mxu0 %v118
    %258 = vmatpush.bf16.msra.mxu0 %v114
    %259 = vmatmul.bf16.gmra.mxu0 %v130
    %v260 = vpop.f32.mrf.mxu0
    %v261 = vadd.f32 %v82, %v260
    %v262 = vpop.f32.mrf.mxu0
    %v263 = vadd.f32 %v82, %v262
    %264 = vmatmul.bf16.gmra.mxu0 %v133
    %v265 = vpop.f32.mrf.mxu0
    %v266 = vadd.f32 %v82, %v265
    %v267 = vpop.f32.mrf.mxu0
    %v268 = vadd.f32 %v82, %v267
    %269 = vmatmul.bf16.gmra.mxu0 %v136
    %v270 = vpop.f32.mrf.mxu0
    %v271 = vadd.f32 %v82, %v270
    %v272 = vpop.f32.mrf.mxu0
    %v273 = vadd.f32 %v82, %v272
    %274 = vmatmul.bf16.gmra.mxu0 %v139
    %v275 = vpop.f32.mrf.mxu0
    %v276 = vadd.f32 %v82, %v275
    %v277 = vpop.f32.mrf.mxu0
    %v278 = vadd.f32 %v82, %v277
    %279 = vmatmul.bf16.gmra.mxu0 %v142
    %v280 = vpop.f32.mrf.mxu0
    %v281 = vadd.f32 %v82, %v280
    %v282 = vpop.f32.mrf.mxu0
    %v283 = vadd.f32 %v82, %v282
    %284 = vmatmul.bf16.gmra.mxu0 %v145
    %v285 = vpop.f32.mrf.mxu0
    %v286 = vadd.f32 %v82, %v285
    %v287 = vpop.f32.mrf.mxu0
    %v288 = vadd.f32 %v82, %v287
    %289 = vmatmul.bf16.gmra.mxu0 %v148
    %v290 = vpop.f32.mrf.mxu0
    %v291 = vadd.f32 %v82, %v290
    %v292 = vpop.f32.mrf.mxu0
    %v293 = vadd.f32 %v82, %v292
    %294 = vmatmul.bf16.gmra.mxu0 %v151
    %v295 = vpop.f32.mrf.mxu0
    %v296 = vadd.f32 %v82, %v295
    %v297 = vpop.f32.mrf.mxu0
    %v298 = vadd.f32 %v82, %v297
    %299 = vdwg.mxu0
    %300 = vmatpush.bf16.msra.mxu0 0
    %301 = vmatpush.bf16.msra.mxu0 0
    %302 = vmatpush.bf16.msra.mxu0 0
    %303 = vmatpush.bf16.msra.mxu0 0
    %304 = vmatpush.bf16.msra.mxu0 0
    %305 = vmatpush.bf16.msra.mxu0 0
    %306 = vmatpush.bf16.msra.mxu0 %v119
    %307 = vmatpush.bf16.msra.mxu0 %v115
    %308 = vmatmul.bf16.gmra.mxu0 %v130
    %v309 = vpop.f32.mrf.mxu0
    %v310 = vadd.f32 %v83, %v309
    %v311 = vpop.f32.mrf.mxu0
    %v312 = vadd.f32 %v83, %v311
    %313 = vmatmul.bf16.gmra.mxu0 %v133
    %v314 = vpop.f32.mrf.mxu0
    %v315 = vadd.f32 %v83, %v314
    %v316 = vpop.f32.mrf.mxu0
    %v317 = vadd.f32 %v83, %v316
    %318 = vmatmul.bf16.gmra.mxu0 %v136
    %v319 = vpop.f32.mrf.mxu0
    %v320 = vadd.f32 %v83, %v319
    %v321 = vpop.f32.mrf.mxu0
    %v322 = vadd.f32 %v83, %v321
    %323 = vmatmul.bf16.gmra.mxu0 %v139
    %v324 = vpop.f32.mrf.mxu0
    %v325 = vadd.f32 %v83, %v324
    %v326 = vpop.f32.mrf.mxu0
    %v327 = vadd.f32 %v83, %v326
    %328 = vmatmul.bf16.gmra.mxu0 %v142
    %v329 = vpop.f32.mrf.mxu0
    %v330 = vadd.f32 %v83, %v329
    %v331 = vpop.f32.mrf.mxu0
    %v332 = vadd.f32 %v83, %v331
    %333 = vmatmul.bf16.gmra.mxu0 %v145
    %v334 = vpop.f32.mrf.mxu0
    %v335 = vadd.f32 %v83, %v334
    %v336 = vpop.f32.mrf.mxu0
    %v337 = vadd.f32 %v83, %v336
    %338 = vmatmul.bf16.gmra.mxu0 %v148
    %v339 = vpop.f32.mrf.mxu0
    %v340 = vadd.f32 %v83, %v339
    %v341 = vpop.f32.mrf.mxu0
    %v342 = vadd.f32 %v83, %v341
    %343 = vmatmul.bf16.gmra.mxu0 %v151
    %v344 = vpop.f32.mrf.mxu0
    %v345 = vadd.f32 %v83, %v344
    %v346 = vpop.f32.mrf.mxu0
    %v347 = vadd.f32 %v83, %v346
    %348 = vdwg.mxu0
    %v349 = vmul.f32 %v163, 0.2
    %v350 = vmul.f32 %v212, 0.2
    %v351 = vmul.f32 %v261, 0.2
    %v352 = vmul.f32 %v310, 0.2
    %v353 = vmul.f32 %v165, 0.2
    %v354 = vmul.f32 %v214, 0.2
    %v355 = vmul.f32 %v263, 0.2
    %v356 = vmul.f32 %v312, 0.2
    %v357 = vmul.f32 %v168, 0.2
    %v358 = vmul.f32 %v217, 0.2
    %v359 = vmul.f32 %v266, 0.2
    %v360 = vmul.f32 %v315, 0.2
    %v361 = vmul.f32 %v170, 0.2
    %v362 = vmul.f32 %v219, 0.2
    %v363 = vmul.f32 %v268, 0.2
    %v364 = vmul.f32 %v317, 0.2
    %v365 = vmul.f32 %v173, 0.2
    %v366 = vmul.f32 %v222, 0.2
    %v367 = vmul.f32 %v271, 0.2
    %v368 = vmul.f32 %v320, 0.2
    %v369 = vmul.f32 %v175, 0.2
    %v370 = vmul.f32 %v224, 0.2
    %v371 = vmul.f32 %v273, 0.2
    %v372 = vmul.f32 %v322, 0.2
    %v373 = vmul.f32 %v178, 0.2
    %v374 = vmul.f32 %v227, 0.2
    %v375 = vmul.f32 %v276, 0.2
    %v376 = vmul.f32 %v325, 0.2
    %v377 = vmul.f32 %v180, 0.2
    %v378 = vmul.f32 %v229, 0.2
    %v379 = vmul.f32 %v278, 0.2
    %v380 = vmul.f32 %v327, 0.2
    %v381 = vmul.f32 %v183, 0.2
    %v382 = vmul.f32 %v232, 0.2
    %v383 = vmul.f32 %v281, 0.2
    %v384 = vmul.f32 %v330, 0.2
    %v385 = vmul.f32 %v185, 0.2
    %v386 = vmul.f32 %v234, 0.2
    %v387 = vmul.f32 %v283, 0.2
    %v388 = vmul.f32 %v332, 0.2
    %v389 = vmul.f32 %v188, 0.2
    %v390 = vmul.f32 %v237, 0.2
    %v391 = vmul.f32 %v286, 0.2
    %v392 = vmul.f32 %v335, 0.2
    %v393 = vmul.f32 %v190, 0.2
    %v394 = vmul.f32 %v239, 0.2
    %v395 = vmul.f32 %v288, 0.2
    %v396 = vmul.f32 %v337, 0.2
    %v397 = vmul.f32 %v193, 0.2
    %v398 = vmul.f32 %v242, 0.2
    %v399 = vmul.f32 %v291, 0.2
    %v400 = vmul.f32 %v340, 0.2
    %v401 = vmul.f32 %v195, 0.2
    %v402 = vmul.f32 %v244, 0.2
    %v403 = vmul.f32 %v293, 0.2
    %v404 = vmul.f32 %v342, 0.2
    %v405 = vmul.f32 %v198, 0.2
    %v406 = vmul.f32 %v247, 0.2
    %v407 = vmul.f32 %v296, 0.2
    %v408 = vmul.f32 %v345, 0.2
    %v409 = vmul.f32 %v200, 0.2
    %v410 = vmul.f32 %v249, 0.2
    %v411 = vmul.f32 %v298, 0.2
    %v412 = vmul.f32 %v347, 0.2
    %v413 = vmax.f32 %v163, %v349
    %v414 = vmax.f32 %v212, %v350
    %v415 = vmax.f32 %v261, %v351
    %v416 = vmax.f32 %v310, %v352
    %v417 = vmax.f32 %v165, %v353
    %v418 = vmax.f32 %v214, %v354
    %v419 = vmax.f32 %v263, %v355
    %v420 = vmax.f32 %v312, %v356
    %v421 = vmax.f32 %v168, %v357
    %v422 = vmax.f32 %v217, %v358
    %v423 = vmax.f32 %v266, %v359
    %v424 = vmax.f32 %v315, %v360
    %v425 = vmax.f32 %v170, %v361
    %v426 = vmax.f32 %v219, %v362
    %v427 = vmax.f32 %v268, %v363
    %v428 = vmax.f32 %v317, %v364
    %v429 = vmax.f32 %v173, %v365
    %v430 = vmax.f32 %v222, %v366
    %v431 = vmax.f32 %v271, %v367
    %v432 = vmax.f32 %v320, %v368
    %v433 = vmax.f32 %v175, %v369
    %v434 = vmax.f32 %v224, %v370
    %v435 = vmax.f32 %v273, %v371
    %v436 = vmax.f32 %v322, %v372
    %v437 = vmax.f32 %v178, %v373
    %v438 = vmax.f32 %v227, %v374
    %v439 = vmax.f32 %v276, %v375
    %v440 = vmax.f32 %v325, %v376
    %v441 = vmax.f32 %v180, %v377
    %v442 = vmax.f32 %v229, %v378
    %v443 = vmax.f32 %v278, %v379
    %v444 = vmax.f32 %v327, %v380
    %v445 = vmax.f32 %v183, %v381
    %v446 = vmax.f32 %v232, %v382
    %v447 = vmax.f32 %v281, %v383
    %v448 = vmax.f32 %v330, %v384
    %v449 = vmax.f32 %v185, %v385
    %v450 = vmax.f32 %v234, %v386
    %v451 = vmax.f32 %v283, %v387
    %v452 = vmax.f32 %v332, %v388
    %v453 = vmax.f32 %v188, %v389
    %v454 = vmax.f32 %v237, %v390
    %v455 = vmax.f32 %v286, %v391
    %v456 = vmax.f32 %v335, %v392
    %v457 = vmax.f32 %v190, %v393
    %v458 = vmax.f32 %v239, %v394
    %v459 = vmax.f32 %v288, %v395
    %v460 = vmax.f32 %v337, %v396
    %v461 = vmax.f32 %v193, %v397
    %v462 = vmax.f32 %v242, %v398
    %v463 = vmax.f32 %v291, %v399
    %v464 = vmax.f32 %v340, %v400
    %v465 = vmax.f32 %v195, %v401
    %v466 = vmax.f32 %v244, %v402
    %v467 = vmax.f32 %v293, %v403
    %v468 = vmax.f32 %v342, %v404
    %v469 = vmax.f32 %v198, %v405
    %v470 = vmax.f32 %v247, %v406
    %v471 = vmax.f32 %v296, %v407
    %v472 = vmax.f32 %v345, %v408
    %v473 = vmax.f32 %v200, %v409
    %v474 = vmax.f32 %v249, %v410
    %v475 = vmax.f32 %v298, %v411
    %v476 = vmax.f32 %v347, %v412
    %v477 = vpack.c.bf16 %v417, %v413
    %v478 = vpack.c.bf16 %v418, %v414
    %v479 = vpack.c.bf16 %v419, %v415
    %v480 = vpack.c.bf16 %v420, %v416
    %v481 = vpack.c.bf16 %v425, %v421
    %v482 = vpack.c.bf16 %v426, %v422
    %v483 = vpack.c.bf16 %v427, %v423
    %v484 = vpack.c.bf16 %v428, %v424
    %v485 = vpack.c.bf16 %v433, %v429
    %v486 = vpack.c.bf16 %v434, %v430
    %v487 = vpack.c.bf16 %v435, %v431
    %v488 = vpack.c.bf16 %v436, %v432
    %v489 = vpack.c.bf16 %v441, %v437
    %v490 = vpack.c.bf16 %v442, %v438
    %v491 = vpack.c.bf16 %v443, %v439
    %v492 = vpack.c.bf16 %v444, %v440
    %v493 = vpack.c.bf16 %v449, %v445
    %v494 = vpack.c.bf16 %v450, %v446
    %v495 = vpack.c.bf16 %v451, %v447
    %v496 = vpack.c.bf16 %v452, %v448
    %v497 = vpack.c.bf16 %v457, %v453
    %v498 = vpack.c.bf16 %v458, %v454
    %v499 = vpack.c.bf16 %v459, %v455
    %v500 = vpack.c.bf16 %v460, %v456
    %v501 = vpack.c.bf16 %v465, %v461
    %v502 = vpack.c.bf16 %v466, %v462
    %v503 = vpack.c.bf16 %v467, %v463
    %v504 = vpack.c.bf16 %v468, %v464
    %v505 = vpack.c.bf16 %v473, %v469
    %v506 = vpack.c.bf16 %v474, %v470
    %v507 = vpack.c.bf16 %v475, %v471
    %v508 = vpack.c.bf16 %v476, %v472
    %v509 = vld [vmem:[#allocation3] sm:$0xff]
    %v510 = vld [vmem:[#allocation3 + $0x8] sm:$0xff]
    %v511 = vld [vmem:[#allocation3 + $0x10] sm:$0xff]
    %v512 = vld [vmem:[#allocation3 + $0x18] sm:$0xff]
    %v513 = vld [vmem:[#allocation3 + $0x20] sm:$0xff]
    %v514 = vld [vmem:[#allocation3 + $0x28] sm:$0xff]
    %v515 = vld [vmem:[#allocation3 + $0x30] sm:$0xff]
    %v516 = vld [vmem:[#allocation3 + $0x38] sm:$0xff]
    %v517 = vld [vmem:[#allocation3 + $0x40] sm:$0xff]
    %v518 = vld [vmem:[#allocation3 + $0x48] sm:$0xff]
    %v519 = vld [vmem:[#allocation3 + $0x50] sm:$0xff]
    %v520 = vld [vmem:[#allocation3 + $0x58] sm:$0xff]
    %v521 = vld [vmem:[#allocation3 + $0x60] sm:$0xff]
    %v522 = vld [vmem:[#allocation3 + $0x68] sm:$0xff]
    %v523 = vld [vmem:[#allocation3 + $0x70] sm:$0xff]
    %v524 = vld [vmem:[#allocation3 + $0x78] sm:$0xff]
    %v525 = vld [vmem:[#allocation3 + $0x80] sm:$0xff]
    %v526 = vld [vmem:[#allocation3 + $0x88] sm:$0xff]
    %v527 = vld [vmem:[#allocation3 + $0x90] sm:$0xff]
    %v528 = vld [vmem:[#allocation3 + $0x98] sm:$0xff]
    %v529 = vld [vmem:[#allocation3 + $0xa0] sm:$0xff]
    %v530 = vld [vmem:[#allocation3 + $0xa8] sm:$0xff]
    %v531 = vld [vmem:[#allocation3 + $0xb0] sm:$0xff]
    %v532 = vld [vmem:[#allocation3 + $0xb8] sm:$0xff]
    %v533 = vld [vmem:[#allocation3 + $0xc0] sm:$0xff]
    %v534 = vld [vmem:[#allocation3 + $0xc8] sm:$0xff]
    %v535 = vld [vmem:[#allocation3 + $0xd0] sm:$0xff]
    %v536 = vld [vmem:[#allocation3 + $0xd8] sm:$0xff]
    %v537 = vld [vmem:[#allocation3 + $0xe0] sm:$0xff]
    %v538 = vld [vmem:[#allocation3 + $0xe8] sm:$0xff]
    %v539 = vld [vmem:[#allocation3 + $0xf0] sm:$0xff]
    %v540 = vld [vmem:[#allocation3 + $0xf8] sm:$0xff]
    %v541 = vld [vmem:[#allocation3 + $0x100] sm:$0xff]
    %v542 = vld [vmem:[#allocation3 + $0x108] sm:$0xff]
    %v543 = vld [vmem:[#allocation3 + $0x110] sm:$0xff]
    %v544 = vld [vmem:[#allocation3 + $0x118] sm:$0xff]
    %v545 = vld [vmem:[#allocation3 + $0x120] sm:$0xff]
    %v546 = vld [vmem:[#allocation3 + $0x128] sm:$0xff]
    %v547 = vld [vmem:[#allocation3 + $0x130] sm:$0xff]
    %v548 = vld [vmem:[#allocation3 + $0x138] sm:$0xff]
    %v549 = vld [vmem:[#allocation3 + $0x140] sm:$0xff]
    %v550 = vld [vmem:[#allocation3 + $0x148] sm:$0xff]
    %v551 = vld [vmem:[#allocation3 + $0x150] sm:$0xff]
    %v552 = vld [vmem:[#allocation3 + $0x158] sm:$0xff]
    %v553 = vld [vmem:[#allocation3 + $0x160] sm:$0xff]
    %v554 = vld [vmem:[#allocation3 + $0x168] sm:$0xff]
    %v555 = vld [vmem:[#allocation3 + $0x170] sm:$0xff]
    %v556 = vld [vmem:[#allocation3 + $0x178] sm:$0xff]
    %v557 = vld [vmem:[#allocation3 + $0x180] sm:$0xff]
    %v558 = vld [vmem:[#allocation3 + $0x188] sm:$0xff]
    %v559 = vld [vmem:[#allocation3 + $0x190] sm:$0xff]
    %v560 = vld [vmem:[#allocation3 + $0x198] sm:$0xff]
    %v561 = vld [vmem:[#allocation3 + $0x1a0] sm:$0xff]
    %v562 = vld [vmem:[#allocation3 + $0x1a8] sm:$0xff]
    %v563 = vld [vmem:[#allocation3 + $0x1b0] sm:$0xff]
    %v564 = vld [vmem:[#allocation3 + $0x1b8] sm:$0xff]
    %v565 = vld [vmem:[#allocation3 + $0x1c0] sm:$0xff]
    %v566 = vld [vmem:[#allocation3 + $0x1c8] sm:$0xff]
    %v567 = vld [vmem:[#allocation3 + $0x1d0] sm:$0xff]
    %v568 = vld [vmem:[#allocation3 + $0x1d8] sm:$0xff]
    %v569 = vld [vmem:[#allocation3 + $0x1e0] sm:$0xff]
    %v570 = vld [vmem:[#allocation3 + $0x1e8] sm:$0xff]
    %v571 = vld [vmem:[#allocation3 + $0x1f0] sm:$0xff]
    %v572 = vld [vmem:[#allocation3 + $0x1f8] sm:$0xff]
    %v573 = vld [vmem:[%s4] sm:$0x3]
    %v575 = vperm.slane %v573, 0
    %v576 = vperm.slane %v573, 1
    %v643 = vunpack.c.l.b16 %v509
    %v644 = vunpack.c.h.b16 %v509
    %v645 = vunpack.c.l.b16 %v510
    %v646 = vunpack.c.h.b16 %v510
    %v647 = vunpack.c.l.b16 %v511
    %v648 = vunpack.c.h.b16 %v511
    %v649 = vunpack.c.l.b16 %v512
    %v650 = vunpack.c.h.b16 %v512
    %v651 = vunpack.c.l.b16 %v513
    %v652 = vunpack.c.h.b16 %v513
    %v653 = vunpack.c.l.b16 %v514
    %v654 = vunpack.c.h.b16 %v514
    %v655 = vunpack.c.l.b16 %v515
    %v656 = vunpack.c.h.b16 %v515
    %v657 = vunpack.c.l.b16 %v516
    %v658 = vunpack.c.h.b16 %v516
    %v659 = vunpack.c.l.b16 %v517
    %v660 = vunpack.c.h.b16 %v517
    %v661 = vunpack.c.l.b16 %v518
    %v662 = vunpack.c.h.b16 %v518
    %v663 = vunpack.c.l.b16 %v519
    %v664 = vunpack.c.h.b16 %v519
    %v665 = vunpack.c.l.b16 %v520
    %v666 = vunpack.c.h.b16 %v520
    %v667 = vunpack.c.l.b16 %v521
    %v668 = vunpack.c.h.b16 %v521
    %v669 = vunpack.c.l.b16 %v522
    %v670 = vunpack.c.h.b16 %v522
    %v671 = vunpack.c.l.b16 %v523
    %v672 = vunpack.c.h.b16 %v523
    %v673 = vunpack.c.l.b16 %v524
    %v674 = vunpack.c.h.b16 %v524
    %v675 = vunpack.c.l.b16 %v525
    %v676 = vunpack.c.h.b16 %v525
    %v677 = vunpack.c.l.b16 %v526
    %v678 = vunpack.c.h.b16 %v526
    %v679 = vunpack.c.l.b16 %v527
    %v680 = vunpack.c.h.b16 %v527
    %v681 = vunpack.c.l.b16 %v528
    %v682 = vunpack.c.h.b16 %v528
    %v683 = vunpack.c.l.b16 %v529
    %v684 = vunpack.c.h.b16 %v529
    %v685 = vunpack.c.l.b16 %v530
    %v686 = vunpack.c.h.b16 %v530
    %v687 = vunpack.c.l.b16 %v531
    %v688 = vunpack.c.h.b16 %v531
    %v689 = vunpack.c.l.b16 %v532
    %v690 = vunpack.c.h.b16 %v532
    %v691 = vunpack.c.l.b16 %v533
    %v692 = vunpack.c.h.b16 %v533
    %v693 = vunpack.c.l.b16 %v534
    %v694 = vunpack.c.h.b16 %v534
    %v695 = vunpack.c.l.b16 %v535
    %v696 = vunpack.c.h.b16 %v535
    %v697 = vunpack.c.l.b16 %v536
    %v698 = vunpack.c.h.b16 %v536
    %v699 = vunpack.c.l.b16 %v537
    %v700 = vunpack.c.h.b16 %v537
    %v701 = vunpack.c.l.b16 %v538
    %v702 = vunpack.c.h.b16 %v538
    %v703 = vunpack.c.l.b16 %v539
    %v704 = vunpack.c.h.b16 %v539
    %v705 = vunpack.c.l.b16 %v540
    %v706 = vunpack.c.h.b16 %v540
    %v707 = vunpack.c.l.b16 %v541
    %v708 = vunpack.c.h.b16 %v541
    %v709 = vunpack.c.l.b16 %v542
    %v710 = vunpack.c.h.b16 %v542
    %v711 = vunpack.c.l.b16 %v543
    %v712 = vunpack.c.h.b16 %v543
    %v713 = vunpack.c.l.b16 %v544
    %v714 = vunpack.c.h.b16 %v544
    %v715 = vunpack.c.l.b16 %v545
    %v716 = vunpack.c.h.b16 %v545
    %v717 = vunpack.c.l.b16 %v546
    %v718 = vunpack.c.h.b16 %v546
    %v719 = vunpack.c.l.b16 %v547
    %v720 = vunpack.c.h.b16 %v547
    %v721 = vunpack.c.l.b16 %v548
    %v722 = vunpack.c.h.b16 %v548
    %v723 = vunpack.c.l.b16 %v549
    %v724 = vunpack.c.h.b16 %v549
    %v725 = vunpack.c.l.b16 %v550
    %v726 = vunpack.c.h.b16 %v550
    %v727 = vunpack.c.l.b16 %v551
    %v728 = vunpack.c.h.b16 %v551
    %v729 = vunpack.c.l.b16 %v552
    %v730 = vunpack.c.h.b16 %v552
    %v731 = vunpack.c.l.b16 %v553
    %v732 = vunpack.c.h.b16 %v553
    %v733 = vunpack.c.l.b16 %v554
    %v734 = vunpack.c.h.b16 %v554
    %v735 = vunpack.c.l.b16 %v555
    %v736 = vunpack.c.h.b16 %v555
    %v737 = vunpack.c.l.b16 %v556
    %v738 = vunpack.c.h.b16 %v556
    %v739 = vunpack.c.l.b16 %v557
    %v740 = vunpack.c.h.b16 %v557
    %v741 = vunpack.c.l.b16 %v558
    %v742 = vunpack.c.h.b16 %v558
    %v743 = vunpack.c.l.b16 %v559
    %v744 = vunpack.c.h.b16 %v559
    %v745 = vunpack.c.l.b16 %v560
    %v746 = vunpack.c.h.b16 %v560
    %v747 = vunpack.c.l.b16 %v561
    %v748 = vunpack.c.h.b16 %v561
    %v749 = vunpack.c.l.b16 %v562
    %v750 = vunpack.c.h.b16 %v562
    %v751 = vunpack.c.l.b16 %v563
    %v752 = vunpack.c.h.b16 %v563
    %v753 = vunpack.c.l.b16 %v564
    %v754 = vunpack.c.h.b16 %v564
    %v755 = vunpack.c.l.b16 %v565
    %v756 = vunpack.c.h.b16 %v565
    %v757 = vunpack.c.l.b16 %v566
    %v758 = vunpack.c.h.b16 %v566
    %v759 = vunpack.c.l.b16 %v567
    %v760 = vunpack.c.h.b16 %v567
    %v761 = vunpack.c.l.b16 %v568
    %v762 = vunpack.c.h.b16 %v568
    %v763 = vunpack.c.l.b16 %v569
    %v764 = vunpack.c.h.b16 %v569
    %v765 = vunpack.c.l.b16 %v570
    %v766 = vunpack.c.h.b16 %v570
    %v767 = vunpack.c.l.b16 %v571
    %v768 = vunpack.c.h.b16 %v571
    %v769 = vunpack.c.l.b16 %v572
    %v770 = vunpack.c.h.b16 %v572
    %v771 = vpack.c.b16 %v645, %v643
    %v772 = vpack.c.b16 %v646, %v644
    %v773 = vpack.c.b16 %v649, %v647
    %v774 = vpack.c.b16 %v650, %v648
    %v775 = vpack.c.b16 %v653, %v651
    %v776 = vpack.c.b16 %v654, %v652
    %v777 = vpack.c.b16 %v657, %v655
    %v778 = vpack.c.b16 %v658, %v656
    %v779 = vpack.c.b16 %v661, %v659
    %v780 = vpack.c.b16 %v662, %v660
    %v781 = vpack.c.b16 %v665, %v663
    %v782 = vpack.c.b16 %v666, %v664
    %v783 = vpack.c.b16 %v669, %v667
    %v784 = vpack.c.b16 %v670, %v668
    %v785 = vpack.c.b16 %v673, %v671
    %v786 = vpack.c.b16 %v674, %v672
    %v787 = vpack.c.b16 %v677, %v675
    %v788 = vpack.c.b16 %v678, %v676
    %v789 = vpack.c.b16 %v681, %v679
    %v790 = vpack.c.b16 %v682, %v680
    %v791 = vpack.c.b16 %v685, %v683
    %v792 = vpack.c.b16 %v686, %v684
    %v793 = vpack.c.b16 %v689, %v687
    %v794 = vpack.c.b16 %v690, %v688
    %v795 = vpack.c.b16 %v693, %v691
    %v796 = vpack.c.b16 %v694, %v692
    %v797 = vpack.c.b16 %v697, %v695
    %v798 = vpack.c.b16 %v698, %v696
    %v799 = vpack.c.b16 %v701, %v699
    %v800 = vpack.c.b16 %v702, %v700
    %v801 = vpack.c.b16 %v705, %v703
    %v802 = vpack.c.b16 %v706, %v704
    %v803 = vpack.c.b16 %v709, %v707
    %v804 = vpack.c.b16 %v710, %v708
    %v805 = vpack.c.b16 %v713, %v711
    %v806 = vpack.c.b16 %v714, %v712
    %v807 = vpack.c.b16 %v717, %v715
    %v808 = vpack.c.b16 %v718, %v716
    %v809 = vpack.c.b16 %v721, %v719
    %v810 = vpack.c.b16 %v722, %v720
    %v811 = vpack.c.b16 %v725, %v723
    %v812 = vpack.c.b16 %v726, %v724
    %v813 = vpack.c.b16 %v729, %v727
    %v814 = vpack.c.b16 %v730, %v728
    %v815 = vpack.c.b16 %v733, %v731
    %v816 = vpack.c.b16 %v734, %v732
    %v817 = vpack.c.b16 %v737, %v735
    %v818 = vpack.c.b16 %v738, %v736
    %v819 = vpack.c.b16 %v741, %v739
    %v820 = vpack.c.b16 %v742, %v740
    %v821 = vpack.c.b16 %v745, %v743
    %v822 = vpack.c.b16 %v746, %v744
    %v823 = vpack.c.b16 %v749, %v747
    %v824 = vpack.c.b16 %v750, %v748
    %v825 = vpack.c.b16 %v753, %v751
    %v826 = vpack.c.b16 %v754, %v752
    %v827 = vpack.c.b16 %v757, %v755
    %v828 = vpack.c.b16 %v758, %v756
    %v829 = vpack.c.b16 %v761, %v759
    %v830 = vpack.c.b16 %v762, %v760
    %v831 = vpack.c.b16 %v765, %v763
    %v832 = vpack.c.b16 %v766, %v764
    %v833 = vpack.c.b16 %v769, %v767
    %v834 = vpack.c.b16 %v770, %v768
    %899 = vmatpush.bf16.msra.mxu0 %v785
    %900 = vmatpush.bf16.msra.mxu0 %v783
    %901 = vmatpush.bf16.msra.mxu0 %v781
    %902 = vmatpush.bf16.msra.mxu0 %v779
    %903 = vmatpush.bf16.msra.mxu0 %v777
    %904 = vmatpush.bf16.msra.mxu0 %v775
    %905 = vmatpush.bf16.msra.mxu0 %v773
    %906 = vmatpush.bf16.msra.mxu0 %v771
    %907 = vmatmul.bf16.gmra.mxu0 %v477
    %v908 = vpop.f32.mrf.mxu0
    %v909 = vadd.f32 %v575, %v908
    %v910 = vpop.f32.mrf.mxu0
    %v911 = vadd.f32 %v575, %v910
    %912 = vmatmul.bf16.gmra.mxu0 %v481
    %v913 = vpop.f32.mrf.mxu0
    %v914 = vadd.f32 %v575, %v913
    %v915 = vpop.f32.mrf.mxu0
    %v916 = vadd.f32 %v575, %v915
    %917 = vmatmul.bf16.gmra.mxu0 %v485
    %v918 = vpop.f32.mrf.mxu0
    %v919 = vadd.f32 %v575, %v918
    %v920 = vpop.f32.mrf.mxu0
    %v921 = vadd.f32 %v575, %v920
    %922 = vmatmul.bf16.gmra.mxu0 %v489
    %v923 = vpop.f32.mrf.mxu0
    %v924 = vadd.f32 %v575, %v923
    %v925 = vpop.f32.mrf.mxu0
    %v926 = vadd.f32 %v575, %v925
    %927 = vmatmul.bf16.gmra.mxu0 %v493
    %v928 = vpop.f32.mrf.mxu0
    %v929 = vadd.f32 %v575, %v928
    %v930 = vpop.f32.mrf.mxu0
    %v931 = vadd.f32 %v575, %v930
    %932 = vmatmul.bf16.gmra.mxu0 %v497
    %v933 = vpop.f32.mrf.mxu0
    %v934 = vadd.f32 %v575, %v933
    %v935 = vpop.f32.mrf.mxu0
    %v936 = vadd.f32 %v575, %v935
    %937 = vmatmul.bf16.gmra.mxu0 %v501
    %v938 = vpop.f32.mrf.mxu0
    %v939 = vadd.f32 %v575, %v938
    %v940 = vpop.f32.mrf.mxu0
    %v941 = vadd.f32 %v575, %v940
    %942 = vmatmul.bf16.gmra.mxu0 %v505
    %v943 = vpop.f32.mrf.mxu0
    %v944 = vadd.f32 %v575, %v943
    %v945 = vpop.f32.mrf.mxu0
    %v946 = vadd.f32 %v575, %v945
    %947 = vdwg.mxu0
    %948 = vmatpush.bf16.msra.mxu0 %v801
    %949 = vmatpush.bf16.msra.mxu0 %v799
    %950 = vmatpush.bf16.msra.mxu0 %v797
    %951 = vmatpush.bf16.msra.mxu0 %v795
    %952 = vmatpush.bf16.msra.mxu0 %v793
    %953 = vmatpush.bf16.msra.mxu0 %v791
    %954 = vmatpush.bf16.msra.mxu0 %v789
    %955 = vmatpush.bf16.msra.mxu0 %v787
    %956 = vmatmul.bf16.gmra.mxu0 %v478
    %v957 = vpop.f32.mrf.mxu0
    %v958 = vadd.f32 %v909, %v957
    %v959 = vpop.f32.mrf.mxu0
    %v960 = vadd.f32 %v911, %v959
    %961 = vmatmul.bf16.gmra.mxu0 %v482
    %v962 = vpop.f32.mrf.mxu0
    %v963 = vadd.f32 %v914, %v962
    %v964 = vpop.f32.mrf.mxu0
    %v965 = vadd.f32 %v916, %v964
    %966 = vmatmul.bf16.gmra.mxu0 %v486
    %v967 = vpop.f32.mrf.mxu0
    %v968 = vadd.f32 %v919, %v967
    %v969 = vpop.f32.mrf.mxu0
    %v970 = vadd.f32 %v921, %v969
    %971 = vmatmul.bf16.gmra.mxu0 %v490
    %v972 = vpop.f32.mrf.mxu0
    %v973 = vadd.f32 %v924, %v972
    %v974 = vpop.f32.mrf.mxu0
    %v975 = vadd.f32 %v926, %v974
    %976 = vmatmul.bf16.gmra.mxu0 %v494
    %v977 = vpop.f32.mrf.mxu0
    %v978 = vadd.f32 %v929, %v977
    %v979 = vpop.f32.mrf.mxu0
    %v980 = vadd.f32 %v931, %v979
    %981 = vmatmul.bf16.gmra.mxu0 %v498
    %v982 = vpop.f32.mrf.mxu0
    %v983 = vadd.f32 %v934, %v982
    %v984 = vpop.f32.mrf.mxu0
    %v985 = vadd.f32 %v936, %v984
    %986 = vmatmul.bf16.gmra.mxu0 %v502
    %v987 = vpop.f32.mrf.mxu0
    %v988 = vadd.f32 %v939, %v987
    %v989 = vpop.f32.mrf.mxu0
    %v990 = vadd.f32 %v941, %v989
    %991 = vmatmul.bf16.gmra.mxu0 %v506
    %v992 = vpop.f32.mrf.mxu0
    %v993 = vadd.f32 %v944, %v992
    %v994 = vpop.f32.mrf.mxu0
    %v995 = vadd.f32 %v946, %v994
    %996 = vdwg.mxu0
    %997 = vmatpush.bf16.msra.mxu0 %v817
    %998 = vmatpush.bf16.msra.mxu0 %v815
    %999 = vmatpush.bf16.msra.mxu0 %v813
    %1000 = vmatpush.bf16.msra.mxu0 %v811
    %1001 = vmatpush.bf16.msra.mxu0 %v809
    %1002 = vmatpush.bf16.msra.mxu0 %v807
    %1003 = vmatpush.bf16.msra.mxu0 %v805
    %1004 = vmatpush.bf16.msra.mxu0 %v803
    %1005 = vmatmul.bf16.gmra.mxu0 %v479
    %v1006 = vpop.f32.mrf.mxu0
    %v1007 = vadd.f32 %v958, %v1006
    %v1008 = vpop.f32.mrf.mxu0
    %v1009 = vadd.f32 %v960, %v1008
    %1010 = vmatmul.bf16.gmra.mxu0 %v483
    %v1011 = vpop.f32.mrf.mxu0
    %v1012 = vadd.f32 %v963, %v1011
    %v1013 = vpop.f32.mrf.mxu0
    %v1014 = vadd.f32 %v965, %v1013
    %1015 = vmatmul.bf16.gmra.mxu0 %v487
    %v1016 = vpop.f32.mrf.mxu0
    %v1017 = vadd.f32 %v968, %v1016
    %v1018 = vpop.f32.mrf.mxu0
    %v1019 = vadd.f32 %v970, %v1018
    %1020 = vmatmul.bf16.gmra.mxu0 %v491
    %v1021 = vpop.f32.mrf.mxu0
    %v1022 = vadd.f32 %v973, %v1021
    %v1023 = vpop.f32.mrf.mxu0
    %v1024 = vadd.f32 %v975, %v1023
    %1025 = vmatmul.bf16.gmra.mxu0 %v495
    %v1026 = vpop.f32.mrf.mxu0
    %v1027 = vadd.f32 %v978, %v1026
    %v1028 = vpop.f32.mrf.mxu0
    %v1029 = vadd.f32 %v980, %v1028
    %1030 = vmatmul.bf16.gmra.mxu0 %v499
    %v1031 = vpop.f32.mrf.mxu0
    %v1032 = vadd.f32 %v983, %v1031
    %v1033 = vpop.f32.mrf.mxu0
    %v1034 = vadd.f32 %v985, %v1033
    %1035 = vmatmul.bf16.gmra.mxu0 %v503
    %v1036 = vpop.f32.mrf.mxu0
    %v1037 = vadd.f32 %v988, %v1036
    %v1038 = vpop.f32.mrf.mxu0
    %v1039 = vadd.f32 %v990, %v1038
    %1040 = vmatmul.bf16.gmra.mxu0 %v507
    %v1041 = vpop.f32.mrf.mxu0
    %v1042 = vadd.f32 %v993, %v1041
    %v1043 = vpop.f32.mrf.mxu0
    %v1044 = vadd.f32 %v995, %v1043
    %1045 = vdwg.mxu0
    %1046 = vmatpush.bf16.msra.mxu0 %v833
    %1047 = vmatpush.bf16.msra.mxu0 %v831
    %1048 = vmatpush.bf16.msra.mxu0 %v829
    %1049 = vmatpush.bf16.msra.mxu0 %v827
    %1050 = vmatpush.bf16.msra.mxu0 %v825
    %1051 = vmatpush.bf16.msra.mxu0 %v823
    %1052 = vmatpush.bf16.msra.mxu0 %v821
    %1053 = vmatpush.bf16.msra.mxu0 %v819
    %1054 = vmatmul.bf16.gmra.mxu0 %v480
    %v1055 = vpop.f32.mrf.mxu0
    %v1056 = vadd.f32 %v1007, %v1055
    %v1057 = vpop.f32.mrf.mxu0
    %v1058 = vadd.f32 %v1009, %v1057
    %1059 = vmatmul.bf16.gmra.mxu0 %v484
    %v1060 = vpop.f32.mrf.mxu0
    %v1061 = vadd.f32 %v1012, %v1060
    %v1062 = vpop.f32.mrf.mxu0
    %v1063 = vadd.f32 %v1014, %v1062
    %1064 = vmatmul.bf16.gmra.mxu0 %v488
    %v1065 = vpop.f32.mrf.mxu0
    %v1066 = vadd.f32 %v1017, %v1065
    %v1067 = vpop.f32.mrf.mxu0
    %v1068 = vadd.f32 %v1019, %v1067
    %1069 = vmatmul.bf16.gmra.mxu0 %v492
    %v1070 = vpop.f32.mrf.mxu0
    %v1071 = vadd.f32 %v1022, %v1070
    %v1072 = vpop.f32.mrf.mxu0
    %v1073 = vadd.f32 %v1024, %v1072
    %1074 = vmatmul.bf16.gmra.mxu0 %v496
    %v1075 = vpop.f32.mrf.mxu0
    %v1076 = vadd.f32 %v1027, %v1075
    %v1077 = vpop.f32.mrf.mxu0
    %v1078 = vadd.f32 %v1029, %v1077
    %1079 = vmatmul.bf16.gmra.mxu0 %v500
    %v1080 = vpop.f32.mrf.mxu0
    %v1081 = vadd.f32 %v1032, %v1080
    %v1082 = vpop.f32.mrf.mxu0
    %v1083 = vadd.f32 %v1034, %v1082
    %1084 = vmatmul.bf16.gmra.mxu0 %v504
    %v1085 = vpop.f32.mrf.mxu0
    %v1086 = vadd.f32 %v1037, %v1085
    %v1087 = vpop.f32.mrf.mxu0
    %v1088 = vadd.f32 %v1039, %v1087
    %1089 = vmatmul.bf16.gmra.mxu0 %v508
    %v1090 = vpop.f32.mrf.mxu0
    %v1091 = vadd.f32 %v1042, %v1090
    %v1092 = vpop.f32.mrf.mxu0
    %v1093 = vadd.f32 %v1044, %v1092
    %1094 = vdwg.mxu0
    %1095 = vmatpush.bf16.msra.mxu0 %v786
    %1096 = vmatpush.bf16.msra.mxu0 %v784
    %1097 = vmatpush.bf16.msra.mxu0 %v782
    %1098 = vmatpush.bf16.msra.mxu0 %v780
    %1099 = vmatpush.bf16.msra.mxu0 %v778
    %1100 = vmatpush.bf16.msra.mxu0 %v776
    %1101 = vmatpush.bf16.msra.mxu0 %v774
    %1102 = vmatpush.bf16.msra.mxu0 %v772
    %1103 = vmatmul.bf16.gmra.mxu0 %v477
    %v1104 = vpop.f32.mrf.mxu0
    %v1105 = vadd.f32 %v576, %v1104
    %v1106 = vpop.f32.mrf.mxu0
    %v1107 = vadd.f32 %v576, %v1106
    %1108 = vmatmul.bf16.gmra.mxu0 %v481
    %v1109 = vpop.f32.mrf.mxu0
    %v1110 = vadd.f32 %v576, %v1109
    %v1111 = vpop.f32.mrf.mxu0
    %v1112 = vadd.f32 %v576, %v1111
    %1113 = vmatmul.bf16.gmra.mxu0 %v485
    %v1114 = vpop.f32.mrf.mxu0
    %v1115 = vadd.f32 %v576, %v1114
    %v1116 = vpop.f32.mrf.mxu0
    %v1117 = vadd.f32 %v576, %v1116
    %1118 = vmatmul.bf16.gmra.mxu0 %v489
    %v1119 = vpop.f32.mrf.mxu0
    %v1120 = vadd.f32 %v576, %v1119
    %v1121 = vpop.f32.mrf.mxu0
    %v1122 = vadd.f32 %v576, %v1121
    %1123 = vmatmul.bf16.gmra.mxu0 %v493
    %v1124 = vpop.f32.mrf.mxu0
    %v1125 = vadd.f32 %v576, %v1124
    %v1126 = vpop.f32.mrf.mxu0
    %v1127 = vadd.f32 %v576, %v1126
    %1128 = vmatmul.bf16.gmra.mxu0 %v497
    %v1129 = vpop.f32.mrf.mxu0
    %v1130 = vadd.f32 %v576, %v1129
    %v1131 = vpop.f32.mrf.mxu0
    %v1132 = vadd.f32 %v576, %v1131
    %1133 = vmatmul.bf16.gmra.mxu0 %v501
    %v1134 = vpop.f32.mrf.mxu0
    %v1135 = vadd.f32 %v576, %v1134
    %v1136 = vpop.f32.mrf.mxu0
    %v1137 = vadd.f32 %v576, %v1136
    %1138 = vmatmul.bf16.gmra.mxu0 %v505
    %v1139 = vpop.f32.mrf.mxu0
    %v1140 = vadd.f32 %v576, %v1139
    %v1141 = vpop.f32.mrf.mxu0
    %v1142 = vadd.f32 %v576, %v1141
    %1143 = vdwg.mxu0
    %1144 = vmatpush.bf16.msra.mxu0 %v802
    %1145 = vmatpush.bf16.msra.mxu0 %v800
    %1146 = vmatpush.bf16.msra.mxu0 %v798
    %1147 = vmatpush.bf16.msra.mxu0 %v796
    %1148 = vmatpush.bf16.msra.mxu0 %v794
    %1149 = vmatpush.bf16.msra.mxu0 %v792
    %1150 = vmatpush.bf16.msra.mxu0 %v790
    %1151 = vmatpush.bf16.msra.mxu0 %v788
    %1152 = vmatmul.bf16.gmra.mxu0 %v478
    %v1153 = vpop.f32.mrf.mxu0
    %v1154 = vadd.f32 %v1105, %v1153
    %v1155 = vpop.f32.mrf.mxu0
    %v1156 = vadd.f32 %v1107, %v1155
    %1157 = vmatmul.bf16.gmra.mxu0 %v482
    %v1158 = vpop.f32.mrf.mxu0
    %v1159 = vadd.f32 %v1110, %v1158
    %v1160 = vpop.f32.mrf.mxu0
    %v1161 = vadd.f32 %v1112, %v1160
    %1162 = vmatmul.bf16.gmra.mxu0 %v486
    %v1163 = vpop.f32.mrf.mxu0
    %v1164 = vadd.f32 %v1115, %v1163
    %v1165 = vpop.f32.mrf.mxu0
    %v1166 = vadd.f32 %v1117, %v1165
    %1167 = vmatmul.bf16.gmra.mxu0 %v490
    %v1168 = vpop.f32.mrf.mxu0
    %v1169 = vadd.f32 %v1120, %v1168
    %v1170 = vpop.f32.mrf.mxu0
    %v1171 = vadd.f32 %v1122, %v1170
    %1172 = vmatmul.bf16.gmra.mxu0 %v494
    %v1173 = vpop.f32.mrf.mxu0
    %v1174 = vadd.f32 %v1125, %v1173
    %v1175 = vpop.f32.mrf.mxu0
    %v1176 = vadd.f32 %v1127, %v1175
    %1177 = vmatmul.bf16.gmra.mxu0 %v498
    %v1178 = vpop.f32.mrf.mxu0
    %v1179 = vadd.f32 %v1130, %v1178
    %v1180 = vpop.f32.mrf.mxu0
    %v1181 = vadd.f32 %v1132, %v1180
    %1182 = vmatmul.bf16.gmra.mxu0 %v502
    %v1183 = vpop.f32.mrf.mxu0
    %v1184 = vadd.f32 %v1135, %v1183
    %v1185 = vpop.f32.mrf.mxu0
    %v1186 = vadd.f32 %v1137, %v1185
    %1187 = vmatmul.bf16.gmra.mxu0 %v506
    %v1188 = vpop.f32.mrf.mxu0
    %v1189 = vadd.f32 %v1140, %v1188
    %v1190 = vpop.f32.mrf.mxu0
    %v1191 = vadd.f32 %v1142, %v1190
    %1192 = vdwg.mxu0
    %1193 = vmatpush.bf16.msra.mxu0 %v818
    %1194 = vmatpush.bf16.msra.mxu0 %v816
    %1195 = vmatpush.bf16.msra.mxu0 %v814
    %1196 = vmatpush.bf16.msra.mxu0 %v812
    %1197 = vmatpush.bf16.msra.mxu0 %v810
    %1198 = vmatpush.bf16.msra.mxu0 %v808
    %1199 = vmatpush.bf16.msra.mxu0 %v806
    %1200 = vmatpush.bf16.msra.mxu0 %v804
    %1201 = vmatmul.bf16.gmra.mxu0 %v479
    %v1202 = vpop.f32.mrf.mxu0
    %v1203 = vadd.f32 %v1154, %v1202
    %v1204 = vpop.f32.mrf.mxu0
    %v1205 = vadd.f32 %v1156, %v1204
    %1206 = vmatmul.bf16.gmra.mxu0 %v483
    %v1207 = vpop.f32.mrf.mxu0
    %v1208 = vadd.f32 %v1159, %v1207
    %v1209 = vpop.f32.mrf.mxu0
    %v1210 = vadd.f32 %v1161, %v1209
    %1211 = vmatmul.bf16.gmra.mxu0 %v487
    %v1212 = vpop.f32.mrf.mxu0
    %v1213 = vadd.f32 %v1164, %v1212
    %v1214 = vpop.f32.mrf.mxu0
    %v1215 = vadd.f32 %v1166, %v1214
    %1216 = vmatmul.bf16.gmra.mxu0 %v491
    %v1217 = vpop.f32.mrf.mxu0
    %v1218 = vadd.f32 %v1169, %v1217
    %v1219 = vpop.f32.mrf.mxu0
    %v1220 = vadd.f32 %v1171, %v1219
    %1221 = vmatmul.bf16.gmra.mxu0 %v495
    %v1222 = vpop.f32.mrf.mxu0
    %v1223 = vadd.f32 %v1174, %v1222
    %v1224 = vpop.f32.mrf.mxu0
    %v1225 = vadd.f32 %v1176, %v1224
    %1226 = vmatmul.bf16.gmra.mxu0 %v499
    %v1227 = vpop.f32.mrf.mxu0
    %v1228 = vadd.f32 %v1179, %v1227
    %v1229 = vpop.f32.mrf.mxu0
    %v1230 = vadd.f32 %v1181, %v1229
    %1231 = vmatmul.bf16.gmra.mxu0 %v503
    %v1232 = vpop.f32.mrf.mxu0
    %v1233 = vadd.f32 %v1184, %v1232
    %v1234 = vpop.f32.mrf.mxu0
    %v1235 = vadd.f32 %v1186, %v1234
    %1236 = vmatmul.bf16.gmra.mxu0 %v507
    %v1237 = vpop.f32.mrf.mxu0
    %v1238 = vadd.f32 %v1189, %v1237
    %v1239 = vpop.f32.mrf.mxu0
    %v1240 = vadd.f32 %v1191, %v1239
    %1241 = vdwg.mxu0
    %1242 = vmatpush.bf16.msra.mxu0 %v834
    %1243 = vmatpush.bf16.msra.mxu0 %v832
    %1244 = vmatpush.bf16.msra.mxu0 %v830
    %1245 = vmatpush.bf16.msra.mxu0 %v828
    %1246 = vmatpush.bf16.msra.mxu0 %v826
    %1247 = vmatpush.bf16.msra.mxu0 %v824
    %1248 = vmatpush.bf16.msra.mxu0 %v822
    %1249 = vmatpush.bf16.msra.mxu0 %v820
    %1250 = vmatmul.bf16.gmra.mxu0 %v480
    %v1251 = vpop.f32.mrf.mxu0
    %v1252 = vadd.f32 %v1203, %v1251
    %v1253 = vpop.f32.mrf.mxu0
    %v1254 = vadd.f32 %v1205, %v1253
    %1255 = vmatmul.bf16.gmra.mxu0 %v484
    %v1256 = vpop.f32.mrf.mxu0
    %v1257 = vadd.f32 %v1208, %v1256
    %v1258 = vpop.f32.mrf.mxu0
    %v1259 = vadd.f32 %v1210, %v1258
    %1260 = vmatmul.bf16.gmra.mxu0 %v488
    %v1261 = vpop.f32.mrf.mxu0
    %v1262 = vadd.f32 %v1213, %v1261
    %v1263 = vpop.f32.mrf.mxu0
    %v1264 = vadd.f32 %v1215, %v1263
    %1265 = vmatmul.bf16.gmra.mxu0 %v492
    %v1266 = vpop.f32.mrf.mxu0
    %v1267 = vadd.f32 %v1218, %v1266
    %v1268 = vpop.f32.mrf.mxu0
    %v1269 = vadd.f32 %v1220, %v1268
    %1270 = vmatmul.bf16.gmra.mxu0 %v496
    %v1271 = vpop.f32.mrf.mxu0
    %v1272 = vadd.f32 %v1223, %v1271
    %v1273 = vpop.f32.mrf.mxu0
    %v1274 = vadd.f32 %v1225, %v1273
    %1275 = vmatmul.bf16.gmra.mxu0 %v500
    %v1276 = vpop.f32.mrf.mxu0
    %v1277 = vadd.f32 %v1228, %v1276
    %v1278 = vpop.f32.mrf.mxu0
    %v1279 = vadd.f32 %v1230, %v1278
    %1280 = vmatmul.bf16.gmra.mxu0 %v504
    %v1281 = vpop.f32.mrf.mxu0
    %v1282 = vadd.f32 %v1233, %v1281
    %v1283 = vpop.f32.mrf.mxu0
    %v1284 = vadd.f32 %v1235, %v1283
    %1285 = vmatmul.bf16.gmra.mxu0 %v508
    %v1286 = vpop.f32.mrf.mxu0
    %v1287 = vadd.f32 %v1238, %v1286
    %v1288 = vpop.f32.mrf.mxu0
    %v1289 = vadd.f32 %v1240, %v1288
    %1290 = vdwg.mxu0
    %v1291 = vmul.f32 %v1056, 0.2
    %v1292 = vmul.f32 %v1252, 0.2
    %v1293 = vmul.f32 %v1058, 0.2
    %v1294 = vmul.f32 %v1254, 0.2
    %v1295 = vmul.f32 %v1061, 0.2
    %v1296 = vmul.f32 %v1257, 0.2
    %v1297 = vmul.f32 %v1063, 0.2
    %v1298 = vmul.f32 %v1259, 0.2
    %v1299 = vmul.f32 %v1066, 0.2
    %v1300 = vmul.f32 %v1262, 0.2
    %v1301 = vmul.f32 %v1068, 0.2
    %v1302 = vmul.f32 %v1264, 0.2
    %v1303 = vmul.f32 %v1071, 0.2
    %v1304 = vmul.f32 %v1267, 0.2
    %v1305 = vmul.f32 %v1073, 0.2
    %v1306 = vmul.f32 %v1269, 0.2
    %v1307 = vmul.f32 %v1076, 0.2
    %v1308 = vmul.f32 %v1272, 0.2
    %v1309 = vmul.f32 %v1078, 0.2
    %v1310 = vmul.f32 %v1274, 0.2
    %v1311 = vmul.f32 %v1081, 0.2
    %v1312 = vmul.f32 %v1277, 0.2
    %v1313 = vmul.f32 %v1083, 0.2
    %v1314 = vmul.f32 %v1279, 0.2
    %v1315 = vmul.f32 %v1086, 0.2
    %v1316 = vmul.f32 %v1282, 0.2
    %v1317 = vmul.f32 %v1088, 0.2
    %v1318 = vmul.f32 %v1284, 0.2
    %v1319 = vmul.f32 %v1091, 0.2
    %v1320 = vmul.f32 %v1287, 0.2
    %v1321 = vmul.f32 %v1093, 0.2
    %v1322 = vmul.f32 %v1289, 0.2
    %v1323 = vmax.f32 %v1056, %v1291
    %v1324 = vmax.f32 %v1252, %v1292
    %v1325 = vmax.f32 %v1058, %v1293
    %v1326 = vmax.f32 %v1254, %v1294
    %v1327 = vmax.f32 %v1061, %v1295
    %v1328 = vmax.f32 %v1257, %v1296
    %v1329 = vmax.f32 %v1063, %v1297
    %v1330 = vmax.f32 %v1259, %v1298
    %v1331 = vmax.f32 %v1066, %v1299
    %v1332 = vmax.f32 %v1262, %v1300
    %v1333 = vmax.f32 %v1068, %v1301
    %v1334 = vmax.f32 %v1264, %v1302
    %v1335 = vmax.f32 %v1071, %v1303
    %v1336 = vmax.f32 %v1267, %v1304
    %v1337 = vmax.f32 %v1073, %v1305
    %v1338 = vmax.f32 %v1269, %v1306
    %v1339 = vmax.f32 %v1076, %v1307
    %v1340 = vmax.f32 %v1272, %v1308
    %v1341 = vmax.f32 %v1078, %v1309
    %v1342 = vmax.f32 %v1274, %v1310
    %v1343 = vmax.f32 %v1081, %v1311
    %v1344 = vmax.f32 %v1277, %v1312
    %v1345 = vmax.f32 %v1083, %v1313
    %v1346 = vmax.f32 %v1279, %v1314
    %v1347 = vmax.f32 %v1086, %v1315
    %v1348 = vmax.f32 %v1282, %v1316
    %v1349 = vmax.f32 %v1088, %v1317
    %v1350 = vmax.f32 %v1284, %v1318
    %v1351 = vmax.f32 %v1091, %v1319
    %v1352 = vmax.f32 %v1287, %v1320
    %v1353 = vmax.f32 %v1093, %v1321
    %v1354 = vmax.f32 %v1289, %v1322
    %v1355 = vld [vmem:[%s5] sm:$0x3]
    %v1357 = vperm.slane %v1355, 0
    %v1358 = vperm.slane %v1355, 1
    %v1361 = vmul.f32 %v1323, %v1357
    %v1362 = vmul.f32 %v1324, %v1358
    %v1363 = vmul.f32 %v1325, %v1357
    %v1364 = vmul.f32 %v1326, %v1358
    %v1365 = vmul.f32 %v1327, %v1357
    %v1366 = vmul.f32 %v1328, %v1358
    %v1367 = vmul.f32 %v1329, %v1357
    %v1368 = vmul.f32 %v1330, %v1358
    %v1369 = vmul.f32 %v1331, %v1357
    %v1370 = vmul.f32 %v1332, %v1358
    %v1371 = vmul.f32 %v1333, %v1357
    %v1372 = vmul.f32 %v1334, %v1358
    %v1373 = vmul.f32 %v1335, %v1357
    %v1374 = vmul.f32 %v1336, %v1358
    %v1375 = vmul.f32 %v1337, %v1357
    %v1376 = vmul.f32 %v1338, %v1358
    %v1377 = vmul.f32 %v1339, %v1357
    %v1378 = vmul.f32 %v1340, %v1358
    %v1379 = vmul.f32 %v1341, %v1357
    %v1380 = vmul.f32 %v1342, %v1358
    %v1381 = vmul.f32 %v1343, %v1357
    %v1382 = vmul.f32 %v1344, %v1358
    %v1383 = vmul.f32 %v1345, %v1357
    %v1384 = vmul.f32 %v1346, %v1358
    %v1385 = vmul.f32 %v1347, %v1357
    %v1386 = vmul.f32 %v1348, %v1358
    %v1387 = vmul.f32 %v1349, %v1357
    %v1388 = vmul.f32 %v1350, %v1358
    %v1389 = vmul.f32 %v1351, %v1357
    %v1390 = vmul.f32 %v1352, %v1358
    %v1391 = vmul.f32 %v1353, %v1357
    %v1392 = vmul.f32 %v1354, %v1358
    %v1393 = vadd.f32 %v1361, %v1362
    %1394 = vadd.xlane.f32.xlu0 %v1393
    %v1395 = vpop.xlane.xlu0 %1394
    %v1396 = vadd.f32 %v1363, %v1364
    %1397 = vadd.xlane.f32.xlu0 %v1396
    %v1398 = vpop.xlane.xlu0 %1397
    %v1399 = vadd.f32 %v1365, %v1366
    %1400 = vadd.xlane.f32.xlu0 %v1399
    %v1401 = vpop.xlane.xlu0 %1400
    %v1402 = vadd.f32 %v1367, %v1368
    %1403 = vadd.xlane.f32.xlu0 %v1402
    %v1404 = vpop.xlane.xlu0 %1403
    %v1405 = vadd.f32 %v1369, %v1370
    %1406 = vadd.xlane.f32.xlu0 %v1405
    %v1407 = vpop.xlane.xlu0 %1406
    %v1408 = vadd.f32 %v1371, %v1372
    %1409 = vadd.xlane.f32.xlu0 %v1408
    %v1410 = vpop.xlane.xlu0 %1409
    %v1411 = vadd.f32 %v1373, %v1374
    %1412 = vadd.xlane.f32.xlu0 %v1411
    %v1413 = vpop.xlane.xlu0 %1412
    %v1414 = vadd.f32 %v1375, %v1376
    %1415 = vadd.xlane.f32.xlu0 %v1414
    %v1416 = vpop.xlane.xlu0 %1415
    %v1417 = vadd.f32 %v1377, %v1378
    %1418 = vadd.xlane.f32.xlu0 %v1417
    %v1419 = vpop.xlane.xlu0 %1418
    %v1420 = vadd.f32 %v1379, %v1380
    %1421 = vadd.xlane.f32.xlu0 %v1420
    %v1422 = vpop.xlane.xlu0 %1421
    %v1423 = vadd.f32 %v1381, %v1382
    %1424 = vadd.xlane.f32.xlu0 %v1423
    %v1425 = vpop.xlane.xlu0 %1424
    %v1426 = vadd.f32 %v1383, %v1384
    %1427 = vadd.xlane.f32.xlu0 %v1426
    %v1428 = vpop.xlane.xlu0 %1427
    %v1429 = vadd.f32 %v1385, %v1386
    %1430 = vadd.xlane.f32.xlu0 %v1429
    %v1431 = vpop.xlane.xlu0 %1430
    %v1432 = vadd.f32 %v1387, %v1388
    %1433 = vadd.xlane.f32.xlu0 %v1432
    %v1434 = vpop.xlane.xlu0 %1433
    %v1435 = vadd.f32 %v1389, %v1390
    %1436 = vadd.xlane.f32.xlu0 %v1435
    %v1437 = vpop.xlane.xlu0 %1436
    %v1438 = vadd.f32 %v1391, %v1392
    %1439 = vadd.xlane.f32.xlu0 %v1438
    %v1440 = vpop.xlane.xlu0 %1439
    %v1441 = vld [vmem:[#allocation2] sm:$0x1]
    %1443 = vset.pattern.permute.xlu0 0
    %1444 = vperm.xlu0 %1443, %v1441
    %v1445 = vpop.permute.xlu0 %1444
    %v1447 = vperm.slane %v1445, 0
    %v1448 = vadd.f32 %v1395, %v1447
    %v1449 = vadd.f32 %v1398, %v1447
    %v1450 = vadd.f32 %v1401, %v1447
    %v1451 = vadd.f32 %v1404, %v1447
    %v1452 = vadd.f32 %v1407, %v1447
    %v1453 = vadd.f32 %v1410, %v1447
    %v1454 = vadd.f32 %v1413, %v1447
    %v1455 = vadd.f32 %v1416, %v1447
    %v1456 = vadd.f32 %v1419, %v1447
    %v1457 = vadd.f32 %v1422, %v1447
    %v1458 = vadd.f32 %v1425, %v1447
    %v1459 = vadd.f32 %v1428, %v1447
    %v1460 = vadd.f32 %v1431, %v1447
    %v1461 = vadd.f32 %v1434, %v1447
    %v1462 = vadd.f32 %v1437, %v1447
    %v1463 = vadd.f32 %v1440, %v1447
    %v1480 = vlaneseq
    %v1481 = vand.u32 %v1480, 127
    %v1482 = vperm.slane %v1448, %v1481
    %v1483 = vadd.s32 %v1481, 4294967288
    %v1484 = vperm.slane %v1449, %v1483
    %vm1485 = vcmask 130112
    %v1486 = vsel %vm1485, %v1484, %v1482
    %v1487 = vadd.s32 %v1481, 4294967280
    %v1488 = vperm.slane %v1450, %v1487
    %vm1489 = vcmask 195712
    %v1490 = vsel %vm1489, %v1488, %v1486
    %v1491 = vadd.s32 %v1481, 4294967272
    %v1492 = vperm.slane %v1451, %v1491
    %vm1493 = vcmask 261312
    %v1494 = vsel %vm1493, %v1492, %v1490
    %v1495 = vadd.s32 %v1481, 4294967264
    %v1496 = vperm.slane %v1452, %v1495
    %vm1497 = vcmask 326912
    %v1498 = vsel %vm1497, %v1496, %v1494
    %v1499 = vadd.s32 %v1481, 4294967256
    %v1500 = vperm.slane %v1453, %v1499
    %vm1501 = vcmask 392512
    %v1502 = vsel %vm1501, %v1500, %v1498
    %v1503 = vadd.s32 %v1481, 4294967248
    %v1504 = vperm.slane %v1454, %v1503
    %vm1505 = vcmask 458112
    %v1506 = vsel %vm1505, %v1504, %v1502
    %v1507 = vadd.s32 %v1481, 4294967240
    %v1508 = vperm.slane %v1455, %v1507
    %vm1509 = vcmask 523712
    %v1510 = vsel %vm1509, %v1508, %v1506
    %v1511 = vadd.s32 %v1481, 4294967232
    %v1512 = vperm.slane %v1456, %v1511
    %vm1513 = vcmask 589312
    %v1514 = vsel %vm1513, %v1512, %v1510
    %v1515 = vadd.s32 %v1481, 4294967224
    %v1516 = vperm.slane %v1457, %v1515
    %vm1517 = vcmask 654912
    %v1518 = vsel %vm1517, %v1516, %v1514
    %v1519 = vadd.s32 %v1481, 4294967216
    %v1520 = vperm.slane %v1458, %v1519
    %vm1521 = vcmask 720512
    %v1522 = vsel %vm1521, %v1520, %v1518
    %v1523 = vadd.s32 %v1481, 4294967208
    %v1524 = vperm.slane %v1459, %v1523
    %vm1525 = vcmask 786112
    %v1526 = vsel %vm1525, %v1524, %v1522
    %v1527 = vadd.s32 %v1481, 4294967200
    %v1528 = vperm.slane %v1460, %v1527
    %vm1529 = vcmask 851712
    %v1530 = vsel %vm1529, %v1528, %v1526
    %v1531 = vadd.s32 %v1481, 4294967192
    %v1532 = vperm.slane %v1461, %v1531
    %vm1533 = vcmask 917312
    %v1534 = vsel %vm1533, %v1532, %v1530
    %v1535 = vadd.s32 %v1481, 4294967184
    %v1536 = vperm.slane %v1462, %v1535
    %vm1537 = vcmask 982912
    %v1538 = vsel %vm1537, %v1536, %v1534
    %v1539 = vadd.s32 %v1481, 4294967176
    %v1540 = vperm.slane %v1463, %v1539
    %vm1541 = vcmask 1048512
    %v1542 = vsel %vm1541, %v1540, %v1538
    %1544 = vst [vmem:[#allocation6] sm:$0x1] %v1542
    // Predicated region
    $region34: #{tpu_custom_call.1} parent=1 // pred_check
      _
    $region35: #{tpu_custom_call.1} parent=1 // pred_check_branch
      %1546 = sbr.rel (0) target = $region37
    $region36: #{tpu_custom_call.1} parent=1 // pred_region
      %1548 = vsyncadd [#allocation5], 0
      %s1550 = sshll.u32 [#allocation6], 4
      %s1551 = int_to_ptr.vmem [resolvable:$true] %s1550
      %s1552 = sshll.u32 %s7, 4
      %s1553 = int_to_ptr.hbm [resolvable:$true] %s1552
      %1555 = dma.vmem_to_hbm [thread:$0]  %s1551, 16, %s1553, [#allocation5]
    $region37: #{tpu_custom_call.1} parent=1 // pred_fallthru
      _
    // Predicated region
    $region38: #{tpu_custom_call.1} parent=1 // pred_check
      _
    $region39: #{tpu_custom_call.1} parent=1 // pred_check_branch
      %1557 = sbr.rel (0) target = $region41
    $region40: #{tpu_custom_call.1} parent=1 // pred_region
      %1559 = dma.done [#allocation5], 16
    $region41: #{tpu_custom_call.1} parent=1 // pred_fallthru
      _
    %1560 = vsyncpa [#allocation4], 1
    %1561 = vsyncpa [#allocation5], 1

</llo_original>
